<compile_context>
chip_gen: v6e
topology: v6e:2x2x1
jax: 0.10.0
libtpu: 0.0.40
codegen_flags: <defaults>
</compile_context>

<pallas_src>
import jax
import jax.numpy as jnp
from jax.experimental import pallas as pl
from jax.experimental.pallas import tpu as pltpu


_MAX_BATCH_BLOCK = 16   # bound on the static unroll over the batch-block dim


def _attention_kernel(g_ref, x_ref, wg_ref, bg_ref, wx_ref, bx_ref,
                      wp_ref, bp_ref, out_ref):
  # Per-block shapes (nb = batch block, t = token tile on the lane axis):
  #   g_ref : (nb, Fg, t)      x_ref : (nb, Fl, t)
  #   wg_ref: (Fint, Fg)       bg_ref: (Fint, 1)   (conv bias + BN1 folded)
  #   wx_ref: (Fint, Fl)       bx_ref: (Fint, 1)   (conv bias + BN2 folded)
  #   wp_ref: (1,   Fint)      bp_ref: (1,   1)    (conv bias + BN3 folded)
  #   out_ref: (nb, Fl, t)
  wg = wg_ref[...]
  wx = wx_ref[...]
  wp = wp_ref[...]
  bg = bg_ref[...]
  bx = bx_ref[...]
  bp = bp_ref[...]

  nb = g_ref.shape[0]
  # nb is a small compile-time constant (wrapper caps it); a static Python
  # unroll keeps every index static and each iteration plain 2-D math.
  for b in range(nb):
    g = g_ref[b]                                              # (Fg, t)
    x = x_ref[b]                                              # (Fl, t)
    # 1x1 convs as MXU matmuls with f32 accumulation; biases are f32.
    g1 = jnp.dot(wg, g, preferred_element_type=jnp.float32) + bg
    x1 = jnp.dot(wx, x, preferred_element_type=jnp.float32) + bx
    p = jnp.maximum(g1 + x1, 0.0)                             # (Fint, t) f32
    # Cast activation to the weight dtype: no-op on the f32 path,
    # single-pass bf16 MXU on the (default) bf16-streaming path.
    psi = jnp.dot(wp, p.astype(wp.dtype),
                  preferred_element_type=jnp.float32) + bp    # (1, t)
    psi = jax.nn.sigmoid(psi)                                 # EUP path, f32
    # Gate: broadcast (1, t) over channels (sublanes); lane-dense store.
    out_ref[b] = (x.astype(jnp.float32) * psi).astype(out_ref.dtype)


def _vmem_capacity_bytes():
  """Physical VMEM of the current generation (128 MiB v5e/v6e, 64 MiB v7x)."""
  try:
    return int(pltpu.get_tpu_info().vmem_capacity_bytes)
  except Exception:               # pragma: no cover - conservative fallback
    return 64 << 20               # v7x per-TensorCore size: safe everywhere


def _largest_aligned_divisor(total, upper):
  """Largest multiple of 128 that divides `total` (itself a multiple of 128)
  and is <= upper; floored at 128."""
  t = min(total, max(128, (upper // 128) * 128))
  while t > 128 and total % t != 0:
    t -= 128
  return t


def _select_tiles(n_batch, hw, bytes_per_token, block_budget_bytes):
  """Pick (HW_pad, token_tile, batch_block).

  One grid step should move as many bytes as the VMEM budget allows (payload
  >> 0.35 us step overhead) while keeping >= 2 grid steps when possible so
  v7x's two TensorCores (sharded over the 'parallel' axes) both get work.
  """
  hw_pad = ((hw + 127) // 128) * 128                 # lane-dense token axis
  max_tokens = max(128, block_budget_bytes // bytes_per_token)
  t = _largest_aligned_divisor(hw_pad, max_tokens)

  nb = 1
  if t == hw_pad:
    if n_batch > 1:
      # Whole padded row fits in one step (deep U-Net stages, small H*W):
      # fold several batch rows per step, but leave >= 2 grid steps.
      cap = min(max_tokens // hw_pad, _MAX_BATCH_BLOCK, n_batch // 2)
      cap = max(cap, 1)
      nb = max(d for d in range(1, cap + 1) if n_batch % d == 0)
    elif hw_pad > 128:
      # Single batch row covering the whole grid: split the token axis so
      # both v7x TensorCores get work (harmless on single-TC v5e/v6e).
      t = _largest_aligned_divisor(hw_pad, hw_pad // 2)
  return hw_pad, t, nb


def attention_block_pallas(g, x, params, *, stream_dtype=jnp.bfloat16,
                           input_buffering=2):
  """Forward pass of the U-Net AttentionBlock (eval-mode BN folded).

  g: (N, F_g, H, W), x: (N, F_l, H, W)  -- NCHW, like PyTorch.
  params = (wg, bg, wx, bx, wp, bp) in math orientation:
      wg:(F_g,F_int) bg:(F_int,)  wx:(F_l,F_int) bx:(F_int,)  wp:(F_int,1) bp:(1,)
  stream_dtype: dtype used to stream g/x/out through HBM.  The kernel is
      HBM-bandwidth bound, so bf16 streaming (default) is ~2x faster on every
      generation; in-kernel math stays f32.  Pass None for bit-exact f32
      (output dtype follows the streamed dtype).
  input_buffering: pipeline depth for the g/x streams (2 = double buffering;
      3 may help for very long grids, costs extra VMEM).
  """
  N, Fg, H, W = g.shape
  _, Fl, _, _ = x.shape
  HW = H * W

  wg, bg, wx, bx, wp, bp = params
  Fint = wg.shape[1]

  # Free reshapes: tokens (H*W) on the lane axis, channels on sublanes.
  g3 = g.reshape(N, Fg, HW)
  x3 = x.reshape(N, Fl, HW)

  # Tiny weights, transposed so matmuls are (Cout, Cin) @ (Cin, tokens).
  wgT = wg.T                                 # (Fint, Fg)
  wxT = wx.T                                 # (Fint, Fl)
  wpT = wp.T                                 # (1, Fint)
  bg2 = bg.reshape(Fint, 1).astype(jnp.float32)
  bx2 = bx.reshape(Fint, 1).astype(jnp.float32)
  bp2 = bp.reshape(1, 1).astype(jnp.float32)

  if stream_dtype is not None:
    g3 = g3.astype(stream_dtype)
    x3 = x3.astype(stream_dtype)
    wgT = wgT.astype(stream_dtype)
    wxT = wxT.astype(stream_dtype)
    wpT = wpT.astype(stream_dtype)

  in_bytes = jnp.dtype(g3.dtype).itemsize
  out_dtype = x3.dtype
  out_bytes = jnp.dtype(out_dtype).itemsize

  # ---- Tile selection from the per-generation VMEM byte budget -------------
  vmem_cap = _vmem_capacity_bytes()
  buffering = max(2, int(input_buffering))
  block_budget = vmem_cap // (2 * buffering)        # single-copy block budget
  bytes_per_token = (Fg + Fl) * in_bytes + Fl * out_bytes   # g+x in, out out
  HW_pad, t_hw, nb = _select_tiles(N, HW, bytes_per_token, block_budget)

  pad = HW_pad - HW
  if pad:
    # Lane-dense padding: full-width vst (no vst.msk) and a predictable
    # double-buffer footprint.  Padded tokens compute 0*psi and are sliced off.
    g3 = jnp.pad(g3, ((0, 0), (0, 0), (0, pad)))
    x3 = jnp.pad(x3, ((0, 0), (0, 0), (0, pad)))

  grid = (N // nb, HW_pad // t_hw)

  # Explicit scoped-VMEM limit: pipelined blocks + headroom, capped below the
  # physical capacity.  (v5e's 16 MiB default would otherwise cap big tiles.)
  block_bytes = nb * t_hw * bytes_per_token
  vmem_limit = max(buffering * block_bytes + (16 << 20), 32 << 20)
  vmem_limit = int(min(vmem_limit, vmem_cap - (8 << 20)))

  pipeline_mode = None if buffering == 2 else pl.Buffered(buffering)

  def tok_spec(c):
    kw = {} if pipeline_mode is None else {"pipeline_mode": pipeline_mode}
    return pl.BlockSpec((nb, c, t_hw), lambda n, i: (n, 0, i), **kw)

  def full_spec(r, c):
    # Whole (tiny) weight arrays, resident across the grid.
    return pl.BlockSpec((r, c), lambda n, i: (0, 0))

  cost = pl.CostEstimate(
      flops=int(2 * N * HW_pad * (Fint * (Fg + Fl) + Fint)),
      transcendentals=int(N * HW_pad),
      bytes_accessed=int(N * HW_pad * bytes_per_token),
  )

  out3 = pl.pallas_call(
      _attention_kernel,
      out_shape=jax.ShapeDtypeStruct((N, Fl, HW_pad), out_dtype),
      grid_spec=pl.GridSpec(
          grid=grid,
          in_specs=[
              tok_spec(Fg),               # g3
              tok_spec(Fl),               # x3
              full_spec(Fint, Fg),        # wgT
              full_spec(Fint, 1),         # bg
              full_spec(Fint, Fl),        # wxT
              full_spec(Fint, 1),         # bx
              full_spec(1, Fint),         # wpT
              full_spec(1, 1),            # bp
          ],
          out_specs=pl.BlockSpec((nb, Fl, t_hw), lambda n, i: (n, 0, i)),
      ),
      compiler_params=pltpu.CompilerParams(
          dimension_semantics=("parallel", "parallel"),
          vmem_limit_bytes=vmem_limit),
      cost_estimate=cost,
  )(g3, x3, wgT, bg2, wxT, bx2, wpT, bp2)

  if pad:
    out3 = out3[:, :, :HW]
  return out3.reshape(N, Fl, H, W)   # free reshape back to NCHW


# ----------------------------------------------------------------------------
# Deterministic parameter construction (synthetic weights; BN in eval mode
# folded into per-output-channel scale/shift).  Distinct PRNG key per tensor.
# ----------------------------------------------------------------------------
def make_params(key, F_g, F_l, F_int, eps=1e-5):
  ks = jax.random.split(key, 18)

  def conv1x1(kw, kb, cin, cout):
    w = jax.random.normal(kw, (cin, cout), jnp.float32) * 0.1
    b = jax.random.normal(kb, (cout,), jnp.float32) * 0.1
    return w, b

  def bn(kg, kb, km, kv, c):
    gamma = 1.0 + 0.1 * jax.random.normal(kg, (c,), jnp.float32)
    beta = 0.1 * jax.random.normal(kb, (c,), jnp.float32)
    mean = 0.1 * jax.random.normal(km, (c,), jnp.float32)
    var = jnp.abs(1.0 + 0.1 * jax.random.normal(kv, (c,), jnp.float32))
    return gamma, beta, mean, var

  def fold(w, b, gamma, beta, mean, var):
    s = gamma / jnp.sqrt(var + eps)               # per-output-channel scale
    return w * s[None, :], (b - mean) * s + beta

  wg, bg = conv1x1(ks[0], ks[1], F_g, F_int)
  wx, bx = conv1x1(ks[2], ks[3], F_l, F_int)
  wp, bp = conv1x1(ks[4], ks[5], F_int, 1)
  bn1 = bn(ks[6], ks[7], ks[8], ks[9], F_int)
  bn2 = bn(ks[10], ks[11], ks[12], ks[13], F_int)
  bn3 = bn(ks[14], ks[15], ks[16], ks[17], 1)

  wg, bg = fold(wg, bg, *bn1)
  wx, bx = fold(wx, bx, *bn2)
  wp, bp = fold(wp, bp, *bn3)
  return wg, bg, wx, bx, wp, bp


def attention_block_ref(g, x, params):
  """Pure-JAX reference with identical math (for correctness checking)."""
  wg, bg, wx, bx, wp, bp = params
  g1 = jnp.einsum('nchw,cf->nfhw', g, wg) + bg[None, :, None, None]
  x1 = jnp.einsum('nchw,cf->nfhw', x, wx) + bx[None, :, None, None]
  p = jnp.maximum(g1 + x1, 0.0)
  psi = jax.nn.sigmoid(
      jnp.einsum('nchw,cf->nfhw', p, wp) + bp[None, :, None, None])
  return x * psi


if __name__ == "__main__":
  F_g, F_l, F_int = 4, 4, 32
  key = jax.random.PRNGKey(0)
  kg, kx, kp, kg2, kx2 = jax.random.split(key, 5)
  params = make_params(kp, F_g, F_l, F_int)

  # Case A: canonical small NCHW shape (batch=2, channels=4, 16x16).
  N, H, W = 2, 16, 16
  g = jax.random.normal(kg, (N, F_g, H, W), jnp.float32)
  x = jax.random.normal(kx, (N, F_l, H, W), jnp.float32)
  ref = attention_block_ref(g, x, params)

  out_f32 = jax.block_until_ready(
      attention_block_pallas(g, x, params, stream_dtype=None))   # exact f32
  assert out_f32.shape == (N, F_l, H, W)
  assert jnp.allclose(out_f32, ref, atol=1e-5, rtol=1e-5)

  out_def = jax.block_until_ready(
      attention_block_pallas(g, x, params))                      # default bf16 streaming
  assert jnp.allclose(out_def.astype(jnp.float32), ref, atol=5e-2, rtol=5e-2)

  # Case B: small-H*W deep-stage shape -> exercises lane padding (64 -> 128
  # tokens) and batch-blocking (4 batch rows per grid step, 2 grid steps).
  N2, H2, W2 = 8, 8, 8
  g2 = jax.random.normal(kg2, (N2, F_g, H2, W2), jnp.float32)
  x2 = jax.random.normal(kx2, (N2, F_l, H2, W2), jnp.float32)
  ref2 = attention_block_ref(g2, x2, params)

  out2_f32 = jax.block_until_ready(
      attention_block_pallas(g2, x2, params, stream_dtype=None))
  assert jnp.allclose(out2_f32, ref2, atol=1e-5, rtol=1e-5)

  out2_def = jax.block_until_ready(attention_block_pallas(g2, x2, params))
  assert jnp.allclose(out2_def.astype(jnp.float32), ref2, atol=5e-2, rtol=5e-2)

  print("KERNEL_OK")
</pallas_src>

<mosaic_0001>
module attributes {stable_mosaic.version = 11 : i64} {
  func.func @_attention_kernel(%arg0: i32, %arg1: i32, %arg2: memref<1x4x256xf32, #tpu.memory_space<vmem>>, %arg3: memref<1x4x256xf32, #tpu.memory_space<vmem>>, %arg4: memref<32x4xf32, #tpu.memory_space<vmem>>, %arg5: memref<32x1xf32, #tpu.memory_space<vmem>>, %arg6: memref<32x4xf32, #tpu.memory_space<vmem>>, %arg7: memref<32x1xf32, #tpu.memory_space<vmem>>, %arg8: memref<1x32xf32, #tpu.memory_space<vmem>>, %arg9: memref<1x1xf32, #tpu.memory_space<vmem>>, %arg10: memref<1x4x256xf32, #tpu.memory_space<vmem>>) attributes {dimension_semantics = [#tpu.dimension_semantics<parallel>, #tpu.dimension_semantics<parallel>], iteration_bounds = array<i64: 2, 1>, scalar_prefetch = 0 : i64, scratch_operands = 0 : i64, tpu.core_type = #tpu.core_type<tc>, window_params = [{transform_indices = @transform_0, window_bounds = array<i64: 1, 4, 256>}, {transform_indices = @transform_1, window_bounds = array<i64: 1, 4, 256>}, {pipeline_mode = #tpu.pipeline_mode<synchronous>, transform_indices = @transform_2, window_bounds = array<i64: 32, 4>}, {pipeline_mode = #tpu.pipeline_mode<synchronous>, transform_indices = @transform_3, window_bounds = array<i64: 32, 1>}, {pipeline_mode = #tpu.pipeline_mode<synchronous>, transform_indices = @transform_4, window_bounds = array<i64: 32, 4>}, {pipeline_mode = #tpu.pipeline_mode<synchronous>, transform_indices = @transform_5, window_bounds = array<i64: 32, 1>}, {pipeline_mode = #tpu.pipeline_mode<synchronous>, transform_indices = @transform_6, window_bounds = array<i64: 1, 32>}, {pipeline_mode = #tpu.pipeline_mode<synchronous>, transform_indices = @transform_7, window_bounds = array<i64: 1, 1>}, {transform_indices = @transform_8, window_bounds = array<i64: 1, 4, 256>}]} {
    %c0 = arith.constant 0 : index
    %c0_0 = arith.constant 0 : index
    %0 = vector.load %arg4[%c0, %c0_0] : memref<32x4xf32, #tpu.memory_space<vmem>>, vector<32x4xf32>
    %c0_1 = arith.constant 0 : index
    %c0_2 = arith.constant 0 : index
    %1 = vector.load %arg6[%c0_1, %c0_2] : memref<32x4xf32, #tpu.memory_space<vmem>>, vector<32x4xf32>
    %c0_3 = arith.constant 0 : index
    %c0_4 = arith.constant 0 : index
    %2 = vector.load %arg8[%c0_3, %c0_4] : memref<1x32xf32, #tpu.memory_space<vmem>>, vector<1x32xf32>
    %c0_5 = arith.constant 0 : index
    %c0_6 = arith.constant 0 : index
    %3 = vector.load %arg5[%c0_5, %c0_6] : memref<32x1xf32, #tpu.memory_space<vmem>>, vector<32x1xf32>
    %c0_7 = arith.constant 0 : index
    %c0_8 = arith.constant 0 : index
    %4 = vector.load %arg7[%c0_7, %c0_8] : memref<32x1xf32, #tpu.memory_space<vmem>>, vector<32x1xf32>
    %c0_9 = arith.constant 0 : index
    %c0_10 = arith.constant 0 : index
    %5 = vector.load %arg9[%c0_9, %c0_10] : memref<1x1xf32, #tpu.memory_space<vmem>>, vector<1x1xf32>
    %c0_11 = arith.constant 0 : index
    %c0_12 = arith.constant 0 : index
    %c0_13 = arith.constant 0 : index
    %6 = vector.load %arg2[%c0_11, %c0_12, %c0_13] : memref<1x4x256xf32, #tpu.memory_space<vmem>>, vector<1x4x256xf32>
    %7 = vector.shape_cast %6 : vector<1x4x256xf32> to vector<4x256xf32>
    %c0_14 = arith.constant 0 : index
    %c0_15 = arith.constant 0 : index
    %c0_16 = arith.constant 0 : index
    %8 = vector.load %arg3[%c0_14, %c0_15, %c0_16] : memref<1x4x256xf32, #tpu.memory_space<vmem>>, vector<1x4x256xf32>
    %9 = vector.shape_cast %8 : vector<1x4x256xf32> to vector<4x256xf32>
    %cst = arith.constant dense<0.000000e+00> : vector<32x256xf32>
    %10 = tpu.matmul %0, %7, %cst {dimension_numbers = #tpu.dot_dimension_numbers<[1], [0], [0], [1], [0, 0, 1, 1], [], []>} : vector<32x4xf32>, vector<4x256xf32>, vector<32x256xf32> -> vector<32x256xf32>
    %11 = vector.broadcast %3 : vector<32x1xf32> to vector<32x256xf32>
    %12 = arith.addf %10, %11 : vector<32x256xf32>
    %cst_17 = arith.constant dense<0.000000e+00> : vector<32x256xf32>
    %13 = tpu.matmul %1, %9, %cst_17 {dimension_numbers = #tpu.dot_dimension_numbers<[1], [0], [0], [1], [0, 0, 1, 1], [], []>} : vector<32x4xf32>, vector<4x256xf32>, vector<32x256xf32> -> vector<32x256xf32>
    %14 = vector.broadcast %4 : vector<32x1xf32> to vector<32x256xf32>
    %15 = arith.addf %13, %14 : vector<32x256xf32>
    %16 = arith.addf %12, %15 : vector<32x256xf32>
    %cst_18 = arith.constant 0.000000e+00 : f32
    %17 = vector.broadcast %cst_18 : f32 to vector<32x256xf32>
    %18 = arith.maximumf %16, %17 : vector<32x256xf32>
    %cst_19 = arith.constant dense<0.000000e+00> : vector<1x256xf32>
    %19 = tpu.matmul %2, %18, %cst_19 {dimension_numbers = #tpu.dot_dimension_numbers<[1], [0], [0], [1], [0, 0, 1, 1], [], []>} : vector<1x32xf32>, vector<32x256xf32>, vector<1x256xf32> -> vector<1x256xf32>
    %20 = vector.broadcast %5 : vector<1x1xf32> to vector<1x256xf32>
    %21 = arith.addf %19, %20 : vector<1x256xf32>
    %22 = arith.negf %21 : vector<1x256xf32>
    %23 = math.exp %22 : vector<1x256xf32>
    %cst_20 = arith.constant 1.000000e+00 : f32
    %24 = vector.broadcast %cst_20 : f32 to vector<1x256xf32>
    %25 = arith.addf %24, %23 : vector<1x256xf32>
    %26 = arith.divf %24, %25 : vector<1x256xf32>
    %27 = vector.broadcast %26 : vector<1x256xf32> to vector<4x256xf32>
    %28 = arith.mulf %9, %27 : vector<4x256xf32>
    %c0_21 = arith.constant 0 : index
    %c0_22 = arith.constant 0 : index
    %c0_23 = arith.constant 0 : index
    %29 = vector.load %arg10[%c0_21, %c0_22, %c0_23] : memref<1x4x256xf32, #tpu.memory_space<vmem>>, vector<1x4x256xf32>
    %30 = vector.shape_cast %29 : vector<1x4x256xf32> to vector<4x256xf32>
    %31 = vector.shape_cast %28 : vector<4x256xf32> to vector<1x4x256xf32>
    tpu.vector_store %arg10[%c0_21, %c0_22, %c0_23], %31 {strides = array<i32>} : memref<1x4x256xf32, #tpu.memory_space<vmem>>, vector<1x4x256xf32>,
    return
  }
  func.func @transform_0(%arg0: i32, %arg1: i32) -> (i32, i32, i32) {
    %c0_i32 = arith.constant 0 : i32
    %c0_i32_0 = arith.constant 0 : i32
    return %arg0, %c0_i32, %arg1 : i32, i32, i32
  }
  func.func @transform_1(%arg0: i32, %arg1: i32) -> (i32, i32, i32) {
    %c0_i32 = arith.constant 0 : i32
    %c0_i32_0 = arith.constant 0 : i32
    return %arg0, %c0_i32, %arg1 : i32, i32, i32
  }
  func.func @transform_2(%arg0: i32, %arg1: i32) -> (i32, i32) {
    %c0_i32 = arith.constant 0 : i32
    %c0_i32_0 = arith.constant 0 : i32
    %c0_i32_1 = arith.constant 0 : i32
    return %c0_i32, %c0_i32_0 : i32, i32
  }
  func.func @transform_3(%arg0: i32, %arg1: i32) -> (i32, i32) {
    %c0_i32 = arith.constant 0 : i32
    %c0_i32_0 = arith.constant 0 : i32
    %c0_i32_1 = arith.constant 0 : i32
    return %c0_i32, %c0_i32_0 : i32, i32
  }
  func.func @transform_4(%arg0: i32, %arg1: i32) -> (i32, i32) {
    %c0_i32 = arith.constant 0 : i32
    %c0_i32_0 = arith.constant 0 : i32
    %c0_i32_1 = arith.constant 0 : i32
    return %c0_i32, %c0_i32_0 : i32, i32
  }
  func.func @transform_5(%arg0: i32, %arg1: i32) -> (i32, i32) {
    %c0_i32 = arith.constant 0 : i32
    %c0_i32_0 = arith.constant 0 : i32
    %c0_i32_1 = arith.constant 0 : i32
    return %c0_i32, %c0_i32_0 : i32, i32
  }
  func.func @transform_6(%arg0: i32, %arg1: i32) -> (i32, i32) {
    %c0_i32 = arith.constant 0 : i32
    %c0_i32_0 = arith.constant 0 : i32
    %c0_i32_1 = arith.constant 0 : i32
    return %c0_i32, %c0_i32_0 : i32, i32
  }
  func.func @transform_7(%arg0: i32, %arg1: i32) -> (i32, i32) {
    %c0_i32 = arith.constant 0 : i32
    %c0_i32_0 = arith.constant 0 : i32
    %c0_i32_1 = arith.constant 0 : i32
    return %c0_i32, %c0_i32_0 : i32, i32
  }
  func.func @transform_8(%arg0: i32, %arg1: i32) -> (i32, i32, i32) {
    %c0_i32 = arith.constant 0 : i32
    %c0_i32_0 = arith.constant 0 : i32
    return %arg0, %c0_i32, %arg1 : i32, i32, i32
  }
}

</mosaic_0001>

<llo_original>
// kernel: tpu_custom_call.1
$region0: #{tpu_custom_call.1}
  #allocation0 [shape = 'u32[]', space=smem, size = 0x4, offset = 0x4, fixed_abs, tag = 'smem constant byte address 0x4 - core index']
  #allocation1 [shape = 'u32[144,128]{1,0:T(1,128)}', space=vmem, size = 0x12000, scoped, tag = 'internal scratch']
  #allocation2 [shape = 'f32[1,1]{1,0:T(1,128)S(1)}', space=vmem, size = 0x200, scoped, tag = 'scoped memory for tpu_custom_call.1']
  %s0 = inlined_call_operand.vmem [shape: f32[2,4,256], index: 0, kind: input, shape index: {}]
  %s1 = inlined_call_operand.vmem [shape: f32[2,4,256], index: 1, kind: input, shape index: {}]
  %s2 = inlined_call_operand.vmem [shape: f32[32,4], index: 2, kind: input, shape index: {}]
  %s3 = inlined_call_operand.vmem [shape: f32[32,1], index: 3, kind: input, shape index: {}]
  %s4 = inlined_call_operand.vmem [shape: f32[32,4], index: 4, kind: input, shape index: {}]
  %s5 = inlined_call_operand.vmem [shape: f32[32,1], index: 5, kind: input, shape index: {}]
  %s6 = inlined_call_operand.vmem [shape: f32[1,32], index: 6, kind: input, shape index: {}]
  %s7 = inlined_call_operand.<no memory space> [shape: f32[1,1], index: 7, kind: input, shape index: {}]
  %s8 = inlined_call_operand.hbm [shape: f32[2,4,256], index: 8, kind: output, shape index: {}]
  %s9 = sld [smem:[#allocation0]]
  $region65: #{tpu_custom_call.1} parent=0
    _
  %s11 = ssub.s32 1, %s9
  %s12 = scalar_select 0, %s11, %s9
  %v13 = vstv %s7
  %14 = vst [vmem:[#allocation2] sm:$0x1] %v13
  $region1: #{tpu_custom_call.1} parent=0
    #allocation3 [shape = 'u8[8192]{0}', space=vmem, size = 0x2000, scoped, tag = 'output window, operand 0']
    #allocation4 [shape = 's32[2]{0}', space=sflag, size = 0x8, scoped, tag = 'scoped memory for tpu_custom_call.1']
    %15 = vsyncpa [#allocation4], 0
    %s16 = scalar_lea.sflag [#allocation4], 1
    %17 = vsyncpa %s16, 0
    loop: start=0, step=1, limit=4
    $region2: #{tpu_custom_call.1} parent=1 // loop_pre_header
      _
    $region3: #{tpu_custom_call.1} parent=1 // loop_header
      %s19 = sphi 0, %s23
      %p20 = scmp.ge.s32.totalorder %s19, 4
      %s26 = sphi 0, %s38
      %s27 = sphi 0, %s34
      %s28 = sphi 0, %s26
      %s29 = sphi 0, %s27
      %s30 = sphi 0, %s28
      %s31 = sphi 0, %s29
      %s43 = sphi 0, %s45
      %s46 = sphi 0, %s43
      %s47 = sphi 0, %s46
      %s63 = sphi 0, %s47
      %s71 = sphi 0, %s73
      %s74 = sphi 0, %s71
      %s75 = sphi 0, %s74
      %s91 = sphi 0, %s75
      %s95 = sphi 0, %s95
      %s97 = sphi 0, %s95
      %s98 = sphi 0, %s97
      %s112 = sphi 0, %s98
      %s116 = sphi 0, %s116
      %s118 = sphi 0, %s116
      %s119 = sphi 0, %s118
      %s133 = sphi 0, %s119
      %s137 = sphi 0, %s137
      %s139 = sphi 0, %s137
      %s140 = sphi 0, %s139
      %s154 = sphi 0, %s140
      %s158 = sphi 0, %s158
      %s160 = sphi 0, %s158
      %s161 = sphi 0, %s160
      %s175 = sphi 0, %s161
      %s179 = sphi 0, %s179
      %s181 = sphi 0, %s179
      %s182 = sphi 0, %s181
      %s196 = sphi 0, %s182
      %s200 = sphi 0, %s200
      %s202 = sphi 0, %s200
      %s203 = sphi 0, %s202
      %s217 = sphi 0, %s203
      %s225 = sphi 0, %s227
      %s228 = sphi 0, %s225
      %s229 = sphi 0, %s228
      %s245 = sphi 0, %s229
    $region4: #{tpu_custom_call.1} parent=1 // loop_header_branch
      %22 = sbr.rel (%p20) target = $region8
    $region5: #{tpu_custom_call.1} parent=1 // loop_body
      %s24 = ssub.s32 %s19, 1
      %s25 = ssub.s32 %s19, 2
      %s32 = sadd.s32 1, %s27
      %p33 = scmp.ge.s32.totalorder %s32, 1
      %s34 = scalar_select %p33, 0, %s32
      %s35 = sadd.s32 1, %s26
      %s36 = scalar_select %p33, %s35, %s26
      %p37 = scmp.ge.s32.totalorder %s36, 2
      %s38 = scalar_select %p37, 0, %s36
      %s39 = ssub.s32 %s26, %s38
      %s40 = ssub.s32 %s27, %s34
      %s41 = sor.u32 %s39, %s40
      %p42 = scmp.eq.s32.totalorder %s41, 0
      %s44 = sadd.s32 %s43, 1
      %s45 = scalar_select %p42, %s43, %s44
      %p48 = pneg %p42
      %p49 = scmp.eq.s32.totalorder %s19, 1
      %p50 = por %p48, %p49
      %p51 = scmp.ne.s32.totalorder %s43, %s46
      %p52 = scmp.eq.s32.totalorder %s19, 0
      %p53 = por %p51, %p52
      %p54 = scmp.ne.s32.totalorder %s43, %s46
      %p55 = scmp.eq.s32.totalorder %s24, 1
      %p56 = por %p54, %p55
      %p57 = scmp.ne.s32.totalorder %s46, %s47
      %p58 = scmp.eq.s32.totalorder %s24, 0
      %p59 = por %p57, %p58
      %p60 = scmp.ne.s32.totalorder %s46, %s47
      %p61 = scmp.eq.s32.totalorder %s25, 1
      %p62 = por %p60, %p61
      %p64 = scmp.ne.s32.totalorder %s47, %s63
      %p65 = scmp.eq.s32.totalorder %s25, 0
      %p66 = por %p64, %p65
      %s67 = ssub.s32 %s26, %s38
      %s68 = ssub.s32 %s27, %s34
      %s69 = sor.u32 %s67, %s68
      %p70 = scmp.eq.s32.totalorder %s69, 0
      %s72 = sadd.s32 %s71, 1
      %s73 = scalar_select %p70, %s71, %s72
      %p76 = pneg %p70
      %p77 = scmp.eq.s32.totalorder %s19, 1
      %p78 = por %p76, %p77
      %p79 = scmp.ne.s32.totalorder %s71, %s74
      %p80 = scmp.eq.s32.totalorder %s19, 0
      %p81 = por %p79, %p80
      %p82 = scmp.ne.s32.totalorder %s71, %s74
      %p83 = scmp.eq.s32.totalorder %s24, 1
      %p84 = por %p82, %p83
      %p85 = scmp.ne.s32.totalorder %s74, %s75
      %p86 = scmp.eq.s32.totalorder %s24, 0
      %p87 = por %p85, %p86
      %p88 = scmp.ne.s32.totalorder %s74, %s75
      %p89 = scmp.eq.s32.totalorder %s25, 1
      %p90 = por %p88, %p89
      %p92 = scmp.ne.s32.totalorder %s75, %s91
      %p93 = scmp.eq.s32.totalorder %s25, 0
      %p94 = por %p92, %p93
      %s96 = sadd.s32 %s95, 1
      %p99 = scmp.eq.s32.totalorder %s19, 1
      %p100 = scmp.ne.s32.totalorder %s95, %s97
      %p101 = scmp.eq.s32.totalorder %s19, 0
      %p102 = por %p100, %p101
      %p103 = scmp.ne.s32.totalorder %s95, %s97
      %p104 = scmp.eq.s32.totalorder %s24, 1
      %p105 = por %p103, %p104
      %p106 = scmp.ne.s32.totalorder %s97, %s98
      %p107 = scmp.eq.s32.totalorder %s24, 0
      %p108 = por %p106, %p107
      %p109 = scmp.ne.s32.totalorder %s97, %s98
      %p110 = scmp.eq.s32.totalorder %s25, 1
      %p111 = por %p109, %p110
      %p113 = scmp.ne.s32.totalorder %s98, %s112
      %p114 = scmp.eq.s32.totalorder %s25, 0
      %p115 = por %p113, %p114
      %s117 = sadd.s32 %s116, 1
      %p120 = scmp.eq.s32.totalorder %s19, 1
      %p121 = scmp.ne.s32.totalorder %s116, %s118
      %p122 = scmp.eq.s32.totalorder %s19, 0
      %p123 = por %p121, %p122
      %p124 = scmp.ne.s32.totalorder %s116, %s118
      %p125 = scmp.eq.s32.totalorder %s24, 1
      %p126 = por %p124, %p125
      %p127 = scmp.ne.s32.totalorder %s118, %s119
      %p128 = scmp.eq.s32.totalorder %s24, 0
      %p129 = por %p127, %p128
      %p130 = scmp.ne.s32.totalorder %s118, %s119
      %p131 = scmp.eq.s32.totalorder %s25, 1
      %p132 = por %p130, %p131
      %p134 = scmp.ne.s32.totalorder %s119, %s133
      %p135 = scmp.eq.s32.totalorder %s25, 0
      %p136 = por %p134, %p135
      %s138 = sadd.s32 %s137, 1
      %p141 = scmp.eq.s32.totalorder %s19, 1
      %p142 = scmp.ne.s32.totalorder %s137, %s139
      %p143 = scmp.eq.s32.totalorder %s19, 0
      %p144 = por %p142, %p143
      %p145 = scmp.ne.s32.totalorder %s137, %s139
      %p146 = scmp.eq.s32.totalorder %s24, 1
      %p147 = por %p145, %p146
      %p148 = scmp.ne.s32.totalorder %s139, %s140
      %p149 = scmp.eq.s32.totalorder %s24, 0
      %p150 = por %p148, %p149
      %p151 = scmp.ne.s32.totalorder %s139, %s140
      %p152 = scmp.eq.s32.totalorder %s25, 1
      %p153 = por %p151, %p152
      %p155 = scmp.ne.s32.totalorder %s140, %s154
      %p156 = scmp.eq.s32.totalorder %s25, 0
      %p157 = por %p155, %p156
      %s159 = sadd.s32 %s158, 1
      %p162 = scmp.eq.s32.totalorder %s19, 1
      %p163 = scmp.ne.s32.totalorder %s158, %s160
      %p164 = scmp.eq.s32.totalorder %s19, 0
      %p165 = por %p163, %p164
      %p166 = scmp.ne.s32.totalorder %s158, %s160
      %p167 = scmp.eq.s32.totalorder %s24, 1
      %p168 = por %p166, %p167
      %p169 = scmp.ne.s32.totalorder %s160, %s161
      %p170 = scmp.eq.s32.totalorder %s24, 0
      %p171 = por %p169, %p170
      %p172 = scmp.ne.s32.totalorder %s160, %s161
      %p173 = scmp.eq.s32.totalorder %s25, 1
      %p174 = por %p172, %p173
      %p176 = scmp.ne.s32.totalorder %s161, %s175
      %p177 = scmp.eq.s32.totalorder %s25, 0
      %p178 = por %p176, %p177
      %s180 = sadd.s32 %s179, 1
      %p183 = scmp.eq.s32.totalorder %s19, 1
      %p184 = scmp.ne.s32.totalorder %s179, %s181
      %p185 = scmp.eq.s32.totalorder %s19, 0
      %p186 = por %p184, %p185
      %p187 = scmp.ne.s32.totalorder %s179, %s181
      %p188 = scmp.eq.s32.totalorder %s24, 1
      %p189 = por %p187, %p188
      %p190 = scmp.ne.s32.totalorder %s181, %s182
      %p191 = scmp.eq.s32.totalorder %s24, 0
      %p192 = por %p190, %p191
      %p193 = scmp.ne.s32.totalorder %s181, %s182
      %p194 = scmp.eq.s32.totalorder %s25, 1
      %p195 = por %p193, %p194
      %p197 = scmp.ne.s32.totalorder %s182, %s196
      %p198 = scmp.eq.s32.totalorder %s25, 0
      %p199 = por %p197, %p198
      %s201 = sadd.s32 %s200, 1
      %p204 = scmp.eq.s32.totalorder %s19, 1
      %p205 = scmp.ne.s32.totalorder %s200, %s202
      %p206 = scmp.eq.s32.totalorder %s19, 0
      %p207 = por %p205, %p206
      %p208 = scmp.ne.s32.totalorder %s200, %s202
      %p209 = scmp.eq.s32.totalorder %s24, 1
      %p210 = por %p208, %p209
      %p211 = scmp.ne.s32.totalorder %s202, %s203
      %p212 = scmp.eq.s32.totalorder %s24, 0
      %p213 = por %p211, %p212
      %p214 = scmp.ne.s32.totalorder %s202, %s203
      %p215 = scmp.eq.s32.totalorder %s25, 1
      %p216 = por %p214, %p215
      %p218 = scmp.ne.s32.totalorder %s203, %s217
      %p219 = scmp.eq.s32.totalorder %s25, 0
      %p220 = por %p218, %p219
      %s221 = ssub.s32 %s26, %s38
      %s222 = ssub.s32 %s27, %s34
      %s223 = sor.u32 %s221, %s222
      %p224 = scmp.eq.s32.totalorder %s223, 0
      %s226 = sadd.s32 %s225, 1
      %s227 = scalar_select %p224, %s225, %s226
      %p230 = pneg %p224
      %p231 = scmp.eq.s32.totalorder %s19, 1
      %p232 = por %p230, %p231
      %p233 = scmp.ne.s32.totalorder %s225, %s228
      %p234 = scmp.eq.s32.totalorder %s19, 0
      %p235 = por %p233, %p234
      %p236 = scmp.ne.s32.totalorder %s225, %s228
      %p237 = scmp.eq.s32.totalorder %s24, 1
      %p238 = por %p236, %p237
      %p239 = scmp.ne.s32.totalorder %s228, %s229
      %p240 = scmp.eq.s32.totalorder %s24, 0
      %p241 = por %p239, %p240
      %p242 = scmp.ne.s32.totalorder %s228, %s229
      %p243 = scmp.eq.s32.totalorder %s25, 1
      %p244 = por %p242, %p243
      %p246 = scmp.ne.s32.totalorder %s229, %s245
      %p247 = scmp.eq.s32.totalorder %s25, 0
      %p248 = por %p246, %p247
      %p249 = scmp.le.s32.totalorder 1, %s19
      %p250 = scmp.lt.s32.totalorder %s19, 3
      %p251 = pnand %p249, %p250
      %p252 = pneg %p251
      // Predicated region
      $region9: #{tpu_custom_call.1} parent=5 // pred_check
        _
      $region10: #{tpu_custom_call.1} parent=5 // pred_check_branch
        %254 = sbr.rel (%p251) target = $region12
      $region11: #{tpu_custom_call.1} parent=5 // pred_region
        %s255 = ssub.s32 %s19, 1
        // Predicated region
        $region13: #{tpu_custom_call.1} parent=11 // pred_check
          %p256 = pneg %p108
        $region14: #{tpu_custom_call.1} parent=11 // pred_check_branch
          %258 = sbr.rel (%p256) target = $region16
        $region15: #{tpu_custom_call.1} parent=11 // pred_region
          _
        $region16: #{tpu_custom_call.1} parent=11 // pred_fallthru
          _
        // Predicated region
        $region17: #{tpu_custom_call.1} parent=11 // pred_check
          %p259 = pneg %p129
        $region18: #{tpu_custom_call.1} parent=11 // pred_check_branch
          %261 = sbr.rel (%p259) target = $region20
        $region19: #{tpu_custom_call.1} parent=11 // pred_region
          _
        $region20: #{tpu_custom_call.1} parent=11 // pred_fallthru
          _
        // Predicated region
        $region21: #{tpu_custom_call.1} parent=11 // pred_check
          %p262 = pneg %p150
        $region22: #{tpu_custom_call.1} parent=11 // pred_check_branch
          %264 = sbr.rel (%p262) target = $region24
        $region23: #{tpu_custom_call.1} parent=11 // pred_region
          _
        $region24: #{tpu_custom_call.1} parent=11 // pred_fallthru
          _
        // Predicated region
        $region25: #{tpu_custom_call.1} parent=11 // pred_check
          %p265 = pneg %p171
        $region26: #{tpu_custom_call.1} parent=11 // pred_check_branch
          %267 = sbr.rel (%p265) target = $region28
        $region27: #{tpu_custom_call.1} parent=11 // pred_region
          _
        $region28: #{tpu_custom_call.1} parent=11 // pred_fallthru
          _
        // Predicated region
        $region29: #{tpu_custom_call.1} parent=11 // pred_check
          %p268 = pneg %p192
        $region30: #{tpu_custom_call.1} parent=11 // pred_check_branch
          %270 = sbr.rel (%p268) target = $region32
        $region31: #{tpu_custom_call.1} parent=11 // pred_region
          _
        $region32: #{tpu_custom_call.1} parent=11 // pred_fallthru
          _
        // Predicated region
        $region33: #{tpu_custom_call.1} parent=11 // pred_check
          %p271 = pneg %p213
        $region34: #{tpu_custom_call.1} parent=11 // pred_check_branch
          %273 = sbr.rel (%p271) target = $region36
        $region35: #{tpu_custom_call.1} parent=11 // pred_region
          _
        $region36: #{tpu_custom_call.1} parent=11 // pred_fallthru
          _
      $region12: #{tpu_custom_call.1} parent=5 // pred_fallthru
        _
      %p274 = scmp.lt.s32.totalorder %s19, 2
      // Predicated region
      $region37: #{tpu_custom_call.1} parent=5 // pred_check
        %p275 = pneg %p274
      $region38: #{tpu_custom_call.1} parent=5 // pred_check_branch
        %277 = sbr.rel (%p275) target = $region40
      $region39: #{tpu_custom_call.1} parent=5 // pred_region
        // Predicated region
        $region41: #{tpu_custom_call.1} parent=39 // pred_check
          %p278 = pneg %p53
        $region42: #{tpu_custom_call.1} parent=39 // pred_check_branch
          %280 = sbr.rel (%p278) target = $region44
        $region43: #{tpu_custom_call.1} parent=39 // pred_region
          %s281 = smul.u32 2, %s27
          %p282 = scmp.lt.s32.totalorder %s26, 1
          %s283 = scalar_select %p282, %s26, 1
          %p284 = scmp.lt.s32.totalorder %s281, 1
          %s285 = scalar_select %p284, %s281, 1
          %s286 = smul.addr %s283, 2
          %s287 = sadd.s32 %s285, %s286
          %s288 = smul.addr %s287, 4
          %s289 = scalar_lea.vmem %s0, %s288
          %s290 = smul.u32 2, %s27
        $region44: #{tpu_custom_call.1} parent=39 // pred_fallthru
          _
        // Predicated region
        $region45: #{tpu_custom_call.1} parent=39 // pred_check
          %p291 = pneg %p81
        $region46: #{tpu_custom_call.1} parent=39 // pred_check_branch
          %293 = sbr.rel (%p291) target = $region48
        $region47: #{tpu_custom_call.1} parent=39 // pred_region
          %s294 = smul.u32 2, %s27
          %p295 = scmp.lt.s32.totalorder %s26, 1
          %s296 = scalar_select %p295, %s26, 1
          %p297 = scmp.lt.s32.totalorder %s294, 1
          %s298 = scalar_select %p297, %s294, 1
          %s299 = smul.addr %s296, 2
          %s300 = sadd.s32 %s298, %s299
          %s301 = smul.addr %s300, 4
          %s302 = scalar_lea.vmem %s1, %s301
          %s303 = smul.u32 2, %s27
        $region48: #{tpu_custom_call.1} parent=39 // pred_fallthru
          _
      $region40: #{tpu_custom_call.1} parent=5 // pred_fallthru
        _
      %p304 = scmp.le.s32.totalorder 1, %s19
      %p305 = scmp.lt.s32.totalorder %s19, 3
      %p306 = pnand %p304, %p305
      %p307 = pneg %p306
      // Predicated region
      $region49: #{tpu_custom_call.1} parent=5 // pred_check
        _
      $region50: #{tpu_custom_call.1} parent=5 // pred_check_branch
        %309 = sbr.rel (%p306) target = $region52
      $region51: #{tpu_custom_call.1} parent=5 // pred_region
        %s310 = ssub.s32 %s19, 1
        %s311 = smul.u32 2, %s29
        %p312 = scmp.lt.s32.totalorder %s28, 1
        %s313 = scalar_select %p312, %s28, 1
        %p314 = scmp.lt.s32.totalorder %s311, 1
        %s315 = scalar_select %p314, %s311, 1
        %s316 = smul.addr %s313, 2
        %s317 = sadd.s32 %s315, %s316
        %s318 = smul.addr %s317, 4
        %s319 = scalar_lea.vmem %s0, %s318
        %p320 = pneg %p59
        %p321 = pneg %p56
        %s322 = smul.u32 2, %s29
        %p323 = scmp.lt.s32.totalorder %s28, 1
        %s324 = scalar_select %p323, %s28, 1
        %p325 = scmp.lt.s32.totalorder %s322, 1
        %s326 = scalar_select %p325, %s322, 1
        %s327 = smul.addr %s324, 2
        %s328 = sadd.s32 %s326, %s327
        %s329 = smul.addr %s328, 4
        %s330 = scalar_lea.vmem %s1, %s329
        %p331 = pneg %p87
        %p332 = pneg %p84
        %p333 = pneg %p108
        %p334 = pneg %p105
        %p335 = pneg %p129
        %p336 = pneg %p126
        %p337 = pneg %p150
        %p338 = pneg %p147
        %p339 = pneg %p171
        %p340 = pneg %p168
        %p341 = pneg %p192
        %p342 = pneg %p189
        %p343 = pneg %p213
        %p344 = pneg %p210
        %p345 = pneg %p241
        %p346 = pneg %p238
        %s347 = sand.u32 %s228, 1
        %s348 = scalar_lea.sflag [#allocation4], %s347
        %s349 = sand.u32 %s228, 1
        %s350 = smul.addr %s349, 8
        %s351 = scalar_lea.vmem [#allocation3], %s350
        %s352 = smul.u32 2, %s29
        %p353 = scmp.lt.s32.totalorder %s28, 1
        %s354 = scalar_select %p353, %s28, 1
        %p355 = scmp.lt.s32.totalorder %s352, 1
        %s356 = scalar_select %p355, %s352, 1
        %s357 = smul.addr %s354, 2
        %s358 = sadd.s32 %s356, %s357
        %s359 = smul.addr %s358, 4
        %s360 = scalar_lea.vmem %s0, %s359
        %s361 = smul.u32 2, %s29
        %s362 = smul.u32 2, %s29
        %p363 = scmp.lt.s32.totalorder %s28, 1
        %s364 = scalar_select %p363, %s28, 1
        %p365 = scmp.lt.s32.totalorder %s362, 1
        %s366 = scalar_select %p365, %s362, 1
        %s367 = smul.addr %s364, 2
        %s368 = sadd.s32 %s366, %s367
        %s369 = smul.addr %s368, 4
        %s370 = scalar_lea.vmem %s1, %s369
        %s371 = smul.u32 2, %s29
        %s372 = smul.u32 2, %s29
        %v373 = vld [vmem:[%s2] sm:$0xff]
        %v374 = vld [vmem:[%s2 + $0x8] sm:$0xff]
        %v375 = vld [vmem:[%s2 + $0x10] sm:$0xff]
        %v376 = vld [vmem:[%s2 + $0x18] sm:$0xff]
        %v377 = vld [vmem:[%s4] sm:$0xff]
        %v378 = vld [vmem:[%s4 + $0x8] sm:$0xff]
        %v379 = vld [vmem:[%s4 + $0x10] sm:$0xff]
        %v380 = vld [vmem:[%s4 + $0x18] sm:$0xff]
        %v381 = vld [vmem:[%s6] sm:$0x1]
        %v382 = vld [vmem:[%s3] sm:$0xff]
        %v383 = vld [vmem:[%s3 + $0x8] sm:$0xff]
        %v384 = vld [vmem:[%s3 + $0x10] sm:$0xff]
        %v385 = vld [vmem:[%s3 + $0x18] sm:$0xff]
        %v386 = vld [vmem:[%s5] sm:$0xff]
        %v387 = vld [vmem:[%s5 + $0x8] sm:$0xff]
        %v388 = vld [vmem:[%s5 + $0x10] sm:$0xff]
        %v389 = vld [vmem:[%s5 + $0x18] sm:$0xff]
        %v390 = vld [vmem:[#allocation2] sm:$0x1]
        %v391 = vld [vmem:[%s360] sm:$0xff]
        %v392 = vld [vmem:[%s370] sm:$0xff]
        %394 = vset.pattern.permute.xlu0 0
        %395 = vperm.xlu0 %394, %v382
        %v396 = vpop.permute.xlu0 %395
        %399 = vset.pattern.permute.xlu0 0
        %400 = vperm.xlu0 %399, %v383
        %v401 = vpop.permute.xlu0 %400
        %404 = vset.pattern.permute.xlu0 0
        %405 = vperm.xlu0 %404, %v384
        %v406 = vpop.permute.xlu0 %405
        %409 = vset.pattern.permute.xlu0 0
        %410 = vperm.xlu0 %409, %v385
        %v411 = vpop.permute.xlu0 %410
        %v414 = vcombine.high %v391, %v391
        %vm415 = vcmask 31744
        %v417 = vsel %vm415, %v373, 0
        %v420 = vsel %vm415, %v374, 0
        %v423 = vsel %vm415, %v375, 0
        %v426 = vsel %vm415, %v376, 0
        %vm428 = vcmask 1043456
        %v429 = vsel %vm428, %v391, 0
        %v431 = vsel %vm428, %v414, 0
        %433 = vmatprep.subr.mxu0 0.0
        %434 = vmatpush1.msra.mxu0 0.0
        %435 = vmatprep.subr.mxu0 0.0
        %436 = vmatpush1.msra.mxu0 0.0
        %437 = vmatprep.subr.mxu0 0.0
        %438 = vmatpush1.msra.mxu0 0.0
        %439 = vmatprep.subr.mxu0 0.0
        %440 = vmatpush1.msra.mxu0 0.0
        %441 = vmatprep.subr.mxu0 0.0
        %442 = vmatpush1.msra.mxu0 0.0
        %443 = vmatprep.subr.mxu0 0.0
        %444 = vmatpush1.msra.mxu0 0.0
        %445 = vmatprep.subr.mxu0 0.0
        %446 = vmatpush1.msra.mxu0 0.0
        %447 = vmatprep.subr.mxu0 0.0
        %448 = vmatpush1.msra.mxu0 0.0
        %449 = vmatprep.subr.mxu0 0.0
        %450 = vmatpush1.msra.mxu0 0.0
        %451 = vmatprep.subr.mxu0 0.0
        %452 = vmatpush1.msra.mxu0 0.0
        %453 = vmatprep.subr.mxu0 0.0
        %454 = vmatpush1.msra.mxu0 0.0
        %455 = vmatprep.subr.mxu0 0.0
        %456 = vmatpush1.msra.mxu0 0.0
        %457 = vmatprep.subr.mxu0 0.0
        %458 = vmatpush1.msra.mxu0 0.0
        %459 = vmatprep.subr.mxu0 0.0
        %460 = vmatpush1.msra.mxu0 0.0
        %461 = vmatprep.subr.mxu0 0.0
        %462 = vmatpush1.msra.mxu0 0.0
        %463 = vmatprep.subr.mxu0 %v431
        %464 = vmatpush1.msra.mxu0 %v429
        %465 = vmatprep.subr.mxu0 0.0
        %466 = vmatpush2.msra.mxu0 0.0
        %467 = vmatprep.subr.mxu0 0.0
        %468 = vmatpush2.msra.mxu0 0.0
        %469 = vmatprep.subr.mxu0 0.0
        %470 = vmatpush2.msra.mxu0 0.0
        %471 = vmatprep.subr.mxu0 0.0
        %472 = vmatpush2.msra.mxu0 0.0
        %473 = vmatprep.subr.mxu0 0.0
        %474 = vmatpush2.msra.mxu0 0.0
        %475 = vmatprep.subr.mxu0 0.0
        %476 = vmatpush2.msra.mxu0 0.0
        %477 = vmatprep.subr.mxu0 0.0
        %478 = vmatpush2.msra.mxu0 0.0
        %479 = vmatprep.subr.mxu0 0.0
        %480 = vmatpush2.msra.mxu0 0.0
        %481 = vmatprep.subr.mxu0 0.0
        %482 = vmatpush2.msra.mxu0 0.0
        %483 = vmatprep.subr.mxu0 0.0
        %484 = vmatpush2.msra.mxu0 0.0
        %485 = vmatprep.subr.mxu0 0.0
        %486 = vmatpush2.msra.mxu0 0.0
        %487 = vmatprep.subr.mxu0 0.0
        %488 = vmatpush2.msra.mxu0 0.0
        %489 = vmatprep.subr.mxu0 0.0
        %490 = vmatpush2.msra.mxu0 0.0
        %491 = vmatprep.subr.mxu0 0.0
        %492 = vmatpush2.msra.mxu0 0.0
        %493 = vmatprep.subr.mxu0 0.0
        %494 = vmatpush2.msra.mxu0 0.0
        %495 = vmatprep.subr.mxu0 0.0
        %496 = vmatpush2.msra.mxu0 0.0
        %497 = vmatprep.mubr.f32.mxu0 0.0
        %498 = vmatmul.mubr.f32.gmra.mxu0 %v417
        %v499 = vpop.f32.mrf.mxu0
        %v500 = vadd.f32 %v396, %v499
        %v501 = vpop.f32.mrf.mxu0
        %v502 = vadd.f32 %v396, %v501
        %503 = vmatprep.mubr.f32.mxu0 0.0
        %504 = vmatmul.mubr.f32.gmra.mxu0 %v420
        %v505 = vpop.f32.mrf.mxu0
        %v506 = vadd.f32 %v401, %v505
        %v507 = vpop.f32.mrf.mxu0
        %v508 = vadd.f32 %v401, %v507
        %509 = vmatprep.mubr.f32.mxu0 0.0
        %510 = vmatmul.mubr.f32.gmra.mxu0 %v423
        %v511 = vpop.f32.mrf.mxu0
        %v512 = vadd.f32 %v406, %v511
        %v513 = vpop.f32.mrf.mxu0
        %v514 = vadd.f32 %v406, %v513
        %515 = vmatprep.mubr.f32.mxu0 0.0
        %516 = vmatmul.mubr.f32.gmra.mxu0 %v426
        %v517 = vpop.f32.mrf.mxu0
        %v518 = vadd.f32 %v411, %v517
        %v519 = vpop.f32.mrf.mxu0
        %v520 = vadd.f32 %v411, %v519
        %521 = vdwg.mxu0
        %523 = vset.pattern.permute.xlu0 0
        %524 = vperm.xlu0 %523, %v386
        %v525 = vpop.permute.xlu0 %524
        %528 = vset.pattern.permute.xlu0 0
        %529 = vperm.xlu0 %528, %v387
        %v530 = vpop.permute.xlu0 %529
        %533 = vset.pattern.permute.xlu0 0
        %534 = vperm.xlu0 %533, %v388
        %v535 = vpop.permute.xlu0 %534
        %538 = vset.pattern.permute.xlu0 0
        %539 = vperm.xlu0 %538, %v389
        %v540 = vpop.permute.xlu0 %539
        %v543 = vcombine.high %v392, %v392
        %v545 = vsel %vm415, %v377, 0
        %v548 = vsel %vm415, %v378, 0
        %v551 = vsel %vm415, %v379, 0
        %v554 = vsel %vm415, %v380, 0
        %v556 = vsel %vm428, %v392, 0
        %v558 = vsel %vm428, %v543, 0
        %560 = vmatprep.subr.mxu0 0.0
        %561 = vmatpush1.msra.mxu0 0.0
        %562 = vmatprep.subr.mxu0 0.0
        %563 = vmatpush1.msra.mxu0 0.0
        %564 = vmatprep.subr.mxu0 0.0
        %565 = vmatpush1.msra.mxu0 0.0
        %566 = vmatprep.subr.mxu0 0.0
        %567 = vmatpush1.msra.mxu0 0.0
        %568 = vmatprep.subr.mxu0 0.0
        %569 = vmatpush1.msra.mxu0 0.0
        %570 = vmatprep.subr.mxu0 0.0
        %571 = vmatpush1.msra.mxu0 0.0
        %572 = vmatprep.subr.mxu0 0.0
        %573 = vmatpush1.msra.mxu0 0.0
        %574 = vmatprep.subr.mxu0 0.0
        %575 = vmatpush1.msra.mxu0 0.0
        %576 = vmatprep.subr.mxu0 0.0
        %577 = vmatpush1.msra.mxu0 0.0
        %578 = vmatprep.subr.mxu0 0.0
        %579 = vmatpush1.msra.mxu0 0.0
        %580 = vmatprep.subr.mxu0 0.0
        %581 = vmatpush1.msra.mxu0 0.0
        %582 = vmatprep.subr.mxu0 0.0
        %583 = vmatpush1.msra.mxu0 0.0
        %584 = vmatprep.subr.mxu0 0.0
        %585 = vmatpush1.msra.mxu0 0.0
        %586 = vmatprep.subr.mxu0 0.0
        %587 = vmatpush1.msra.mxu0 0.0
        %588 = vmatprep.subr.mxu0 0.0
        %589 = vmatpush1.msra.mxu0 0.0
        %590 = vmatprep.subr.mxu0 %v558
        %591 = vmatpush1.msra.mxu0 %v556
        %592 = vmatprep.subr.mxu0 0.0
        %593 = vmatpush2.msra.mxu0 0.0
        %594 = vmatprep.subr.mxu0 0.0
        %595 = vmatpush2.msra.mxu0 0.0
        %596 = vmatprep.subr.mxu0 0.0
        %597 = vmatpush2.msra.mxu0 0.0
        %598 = vmatprep.subr.mxu0 0.0
        %599 = vmatpush2.msra.mxu0 0.0
        %600 = vmatprep.subr.mxu0 0.0
        %601 = vmatpush2.msra.mxu0 0.0
        %602 = vmatprep.subr.mxu0 0.0
        %603 = vmatpush2.msra.mxu0 0.0
        %604 = vmatprep.subr.mxu0 0.0
        %605 = vmatpush2.msra.mxu0 0.0
        %606 = vmatprep.subr.mxu0 0.0
        %607 = vmatpush2.msra.mxu0 0.0
        %608 = vmatprep.subr.mxu0 0.0
        %609 = vmatpush2.msra.mxu0 0.0
        %610 = vmatprep.subr.mxu0 0.0
        %611 = vmatpush2.msra.mxu0 0.0
        %612 = vmatprep.subr.mxu0 0.0
        %613 = vmatpush2.msra.mxu0 0.0
        %614 = vmatprep.subr.mxu0 0.0
        %615 = vmatpush2.msra.mxu0 0.0
        %616 = vmatprep.subr.mxu0 0.0
        %617 = vmatpush2.msra.mxu0 0.0
        %618 = vmatprep.subr.mxu0 0.0
        %619 = vmatpush2.msra.mxu0 0.0
        %620 = vmatprep.subr.mxu0 0.0
        %621 = vmatpush2.msra.mxu0 0.0
        %622 = vmatprep.subr.mxu0 0.0
        %623 = vmatpush2.msra.mxu0 0.0
        %624 = vmatprep.mubr.f32.mxu0 0.0
        %625 = vmatmul.mubr.f32.gmra.mxu0 %v545
        %v626 = vpop.f32.mrf.mxu0
        %v627 = vadd.f32 %v525, %v626
        %v628 = vpop.f32.mrf.mxu0
        %v629 = vadd.f32 %v525, %v628
        %630 = vmatprep.mubr.f32.mxu0 0.0
        %631 = vmatmul.mubr.f32.gmra.mxu0 %v548
        %v632 = vpop.f32.mrf.mxu0
        %v633 = vadd.f32 %v530, %v632
        %v634 = vpop.f32.mrf.mxu0
        %v635 = vadd.f32 %v530, %v634
        %636 = vmatprep.mubr.f32.mxu0 0.0
        %637 = vmatmul.mubr.f32.gmra.mxu0 %v551
        %v638 = vpop.f32.mrf.mxu0
        %v639 = vadd.f32 %v535, %v638
        %v640 = vpop.f32.mrf.mxu0
        %v641 = vadd.f32 %v535, %v640
        %642 = vmatprep.mubr.f32.mxu0 0.0
        %643 = vmatmul.mubr.f32.gmra.mxu0 %v554
        %v644 = vpop.f32.mrf.mxu0
        %v645 = vadd.f32 %v540, %v644
        %v646 = vpop.f32.mrf.mxu0
        %v647 = vadd.f32 %v540, %v646
        %648 = vdwg.mxu0
        %v649 = vadd.f32 %v500, %v627
        %v650 = vadd.f32 %v502, %v629
        %v651 = vadd.f32 %v506, %v633
        %v652 = vadd.f32 %v508, %v635
        %v653 = vadd.f32 %v512, %v639
        %v654 = vadd.f32 %v514, %v641
        %v655 = vadd.f32 %v518, %v645
        %v656 = vadd.f32 %v520, %v647
        %v657 = vmax.f32 %v649, 0.0
        %v658 = vmax.f32 %v650, 0.0
        %v659 = vmax.f32 %v651, 0.0
        %v660 = vmax.f32 %v652, 0.0
        %v661 = vmax.f32 %v653, 0.0
        %v662 = vmax.f32 %v654, 0.0
        %v663 = vmax.f32 %v655, 0.0
        %v664 = vmax.f32 %v656, 0.0
        %666 = vset.pattern.permute.xlu0 0
        %667 = vperm.xlu0 %666, %v390
        %v668 = vpop.permute.xlu0 %667
        %v670 = vlaneseq
        %v671 = vshrl.u32 %v670, 7
        %v672 = vsub.s32 0, %v671
        %v673 = vrot.slane %v668, %v672
        %vm674 = vcmask 261120
        %v676 = vsel %vm674, %v381, 0
        %678 = vmatprep.subr.mxu0 0.0
        %679 = vmatpush1.msra.mxu0 0.0
        %680 = vmatprep.subr.mxu0 0.0
        %681 = vmatpush1.msra.mxu0 0.0
        %682 = vmatprep.subr.mxu0 0.0
        %683 = vmatpush1.msra.mxu0 0.0
        %684 = vmatprep.subr.mxu0 0.0
        %685 = vmatpush1.msra.mxu0 0.0
        %686 = vmatprep.subr.mxu0 0.0
        %687 = vmatpush1.msra.mxu0 0.0
        %688 = vmatprep.subr.mxu0 0.0
        %689 = vmatpush1.msra.mxu0 0.0
        %690 = vmatprep.subr.mxu0 0.0
        %691 = vmatpush1.msra.mxu0 0.0
        %692 = vmatprep.subr.mxu0 0.0
        %693 = vmatpush1.msra.mxu0 0.0
        %694 = vmatprep.subr.mxu0 0.0
        %695 = vmatpush1.msra.mxu0 0.0
        %696 = vmatprep.subr.mxu0 0.0
        %697 = vmatpush1.msra.mxu0 0.0
        %698 = vmatprep.subr.mxu0 0.0
        %699 = vmatpush1.msra.mxu0 0.0
        %700 = vmatprep.subr.mxu0 0.0
        %701 = vmatpush1.msra.mxu0 0.0
        %702 = vmatprep.subr.mxu0 %v664
        %703 = vmatpush1.msra.mxu0 %v663
        %704 = vmatprep.subr.mxu0 %v662
        %705 = vmatpush1.msra.mxu0 %v661
        %706 = vmatprep.subr.mxu0 %v660
        %707 = vmatpush1.msra.mxu0 %v659
        %708 = vmatprep.subr.mxu0 %v658
        %709 = vmatpush1.msra.mxu0 %v657
        %710 = vmatprep.subr.mxu0 0.0
        %711 = vmatpush2.msra.mxu0 0.0
        %712 = vmatprep.subr.mxu0 0.0
        %713 = vmatpush2.msra.mxu0 0.0
        %714 = vmatprep.subr.mxu0 0.0
        %715 = vmatpush2.msra.mxu0 0.0
        %716 = vmatprep.subr.mxu0 0.0
        %717 = vmatpush2.msra.mxu0 0.0
        %718 = vmatprep.subr.mxu0 0.0
        %719 = vmatpush2.msra.mxu0 0.0
        %720 = vmatprep.subr.mxu0 0.0
        %721 = vmatpush2.msra.mxu0 0.0
        %722 = vmatprep.subr.mxu0 0.0
        %723 = vmatpush2.msra.mxu0 0.0
        %724 = vmatprep.subr.mxu0 0.0
        %725 = vmatpush2.msra.mxu0 0.0
        %726 = vmatprep.subr.mxu0 0.0
        %727 = vmatpush2.msra.mxu0 0.0
        %728 = vmatprep.subr.mxu0 0.0
        %729 = vmatpush2.msra.mxu0 0.0
        %730 = vmatprep.subr.mxu0 0.0
        %731 = vmatpush2.msra.mxu0 0.0
        %732 = vmatprep.subr.mxu0 0.0
        %733 = vmatpush2.msra.mxu0 0.0
        %734 = vmatprep.subr.mxu0 0.0
        %735 = vmatpush2.msra.mxu0 0.0
        %736 = vmatprep.subr.mxu0 0.0
        %737 = vmatpush2.msra.mxu0 0.0
        %738 = vmatprep.subr.mxu0 0.0
        %739 = vmatpush2.msra.mxu0 0.0
        %740 = vmatprep.subr.mxu0 0.0
        %741 = vmatpush2.msra.mxu0 0.0
        %742 = vmatprep.mubr.f32.mxu0 0.0
        %743 = vmatmul.mubr.f32.gmra.mxu0 %v676
        %v744 = vpop.f32.mrf.mxu0
        %v745 = vadd.f32 %v673, %v744
        %v746 = vpop.f32.mrf.mxu0
        %v747 = vadd.f32 %v673, %v746
        %748 = vdwg.mxu0
        %v749 = vxor.u32 %v745, 2147483648
        %v750 = vxor.u32 %v747, 2147483648
        %v751 = vmul.f32 %v749, 1.442695
        %v752 = vpow.pop %v751
        %v753 = vmul.f32 %v750, 1.442695
        %v754 = vpow.pop %v753
        %v755 = vadd.f32 %v752, 1.0
        %v756 = vadd.f32 %v754, 1.0
        %v757 = vrcp.pop %v755
        %v758 = vmul.f32 1.0, %v757
        %v759 = vrcp.pop %v756
        %v760 = vmul.f32 1.0, %v759
        %v761 = vlaneseq
        %v762 = vshrl.u32 %v761, 7
        %v763 = vsub.s32 0, %v762
        %v764 = vrot.slane %v758, %v763
        %v765 = vlaneseq
        %v766 = vshrl.u32 %v765, 7
        %v767 = vsub.s32 0, %v766
        %v768 = vrot.slane %v760, %v767
        %v771 = vcombine.low %v764, %v768
        %v773 = vmul.f32 %v392, %v771
        %774 = vst [vmem:[%s351] sm:$0xff] %v773
        %s775 = sand.u32 %s228, 1
        %s776 = scalar_lea.sflag [#allocation4], %s775
        %s777 = sand.u32 %s228, 1
        %s778 = smul.addr %s777, 8
        %s779 = scalar_lea.vmem [#allocation3], %s778
        // Predicated region
        $region53: #{tpu_custom_call.1} parent=51 // pred_check
          %p780 = pneg %p238
        $region54: #{tpu_custom_call.1} parent=51 // pred_check_branch
          %782 = sbr.rel (%p780) target = $region56
        $region55: #{tpu_custom_call.1} parent=51 // pred_region
          %s783 = smul.u32 2, %s29
          %s785 = ssub.s32 128, 128
          %786 = vsyncadd %s776, %s785
          %s787 = smul.addr %s28, 2
          %s788 = sadd.s32 %s783, %s787
          %s789 = smul.addr %s788, 64
          %s790 = scalar_lea.hbm %s8, %s789
          %s792 = sshll.u32 %s779, 4
          %s793 = int_to_ptr.vmem [resolvable:$true] %s792
          %795 = dma.vmem_to_hbm [thread:$0]  %s793, 128, %s790, %s776
        $region56: #{tpu_custom_call.1} parent=51 // pred_fallthru
          _
      $region52: #{tpu_custom_call.1} parent=5 // pred_fallthru
        _
      %p796 = scmp.le.s32.totalorder 2, %s19
      // Predicated region
      $region57: #{tpu_custom_call.1} parent=5 // pred_check
        %p797 = pneg %p796
      $region58: #{tpu_custom_call.1} parent=5 // pred_check_branch
        %799 = sbr.rel (%p797) target = $region60
      $region59: #{tpu_custom_call.1} parent=5 // pred_region
        %s800 = ssub.s32 %s19, 2
        // Predicated region
        $region61: #{tpu_custom_call.1} parent=59 // pred_check
          %p801 = pneg %p244
        $region62: #{tpu_custom_call.1} parent=59 // pred_check_branch
          %803 = sbr.rel (%p801) target = $region64
        $region63: #{tpu_custom_call.1} parent=59 // pred_region
          %s804 = sand.u32 %s229, 1
          %s805 = scalar_lea.sflag [#allocation4], %s804
          %s806 = sand.u32 %s229, 1
          %s807 = smul.addr %s806, 8
          %s808 = scalar_lea.vmem [#allocation3], %s807
          %809 = dma.done %s805, 128
        $region64: #{tpu_custom_call.1} parent=59 // pred_fallthru
          _
      $region60: #{tpu_custom_call.1} parent=5 // pred_fallthru
        _
    $region6: #{tpu_custom_call.1} parent=1 // loop_footer
      %s23 = sadd.s32 1, %s19
    $region7: #{tpu_custom_call.1} parent=1 // loop_footer_branch
      %18 = sbr.rel target = $region3
    $region8: #{tpu_custom_call.1} parent=1 // loop_exit
      _
    %810 = vsyncpa [#allocation4], 1
    %s811 = scalar_lea.sflag [#allocation4], 1
    %812 = vsyncpa %s811, 1

</llo_original>
